<compile_context>
chip_gen: v7x
topology: tpu7x:2x2x1
jax: 0.10.0
libtpu: 0.0.40
codegen_flags: <defaults>
</compile_context>

<pallas_src>
import functools

import jax
import jax.numpy as jnp
from jax import lax
from jax.experimental import pallas as pl
from jax.experimental.pallas import tpu as pltpu


def _vq_kernel(x_ref, cb_ref, cb_neg2_ref, cb_sq_ref,
               quant_ref, idx_ref, err_ref, *, chunk_t):
    """One grid step processes a (1, D, tile_t) tile of the (B, C, T) input.

    x_ref      : (1, D, tile_t)  x.dtype  input tile (channel-first)
    cb_ref     : (K, D)          f32      full codebook (resident)
    cb_neg2_ref: (K, D)          f32      -2 * codebook (resident)
    cb_sq_ref  : (K, 1)          f32      precomputed ||e_k||^2 (resident)
    quant_ref  : (1, D, tile_t)  x.dtype  quantized output tile
    idx_ref    : (1, 1, tile_t)  i32      argmin codebook indices
    err_ref    : (1, 1, 1, 1)    f32      per-tile sum of ||x - e_idx||^2
    """
    tile_t = x_ref.shape[2]
    n_chunks = tile_t // chunk_t

    cb = cb_ref[...]              # (K, D)  f32
    cb_neg2 = cb_neg2_ref[...]    # (K, D)  f32
    cb_sq = cb_sq_ref[...]        # (K, 1)  f32
    K = cb.shape[0]

    def body(c, err_acc):
        t0 = pl.multiple_of(c * chunk_t, chunk_t)
        x_c = x_ref[0, :, pl.ds(t0, chunk_t)].astype(jnp.float32)      # (D, chunk)

        # dist[k, t] = ||e_k||^2 - 2 e_k . x_t   (x^2 term dropped: per-column
        # constant, argmin-invariant; the -2 scale is pre-folded into cb_neg2).
        dist = cb_sq + lax.dot_general(
            cb_neg2, x_c, (((1,), (0,)), ((), ())),
            preferred_element_type=jnp.float32)                         # (K, chunk)

        # First-minimal-index argmin over the codebook axis (matches torch.argmin).
        # iota is regenerated per chunk (cheap VPU fill) rather than held live
        # across the loop (it alone would be a large fraction of the vreg file).
        iota_k = lax.broadcasted_iota(jnp.int32, (K, chunk_t), 0)
        min_val = jnp.min(dist, axis=0, keepdims=True)                  # (1, chunk)
        masked = jnp.where(dist == min_val, iota_k, K)                  # (K, chunk)
        idx = jnp.min(masked, axis=0, keepdims=True)                    # (1, chunk)

        # Gather codebook rows via one-hot matmul (MXU-friendly gather), reusing
        # the already-live masked array for the one-hot.
        one_hot = (masked == idx).astype(jnp.float32)                   # (K, chunk)
        quant = lax.dot_general(
            cb, one_hot, (((0,), (0,)), ((), ())),
            preferred_element_type=jnp.float32)                         # (D, chunk)

        quant_ref[0, :, pl.ds(t0, chunk_t)] = quant.astype(quant_ref.dtype)
        idx_ref[0, :, pl.ds(t0, chunk_t)] = idx

        # ||x_t - e_idx||^2 = ||x_t||^2 + min_val  (min_val = ||e||^2 - 2 e.x),
        # so no (quant - x) materialization is needed for the error.
        return err_acc + (jnp.sum(x_c * x_c) + jnp.sum(min_val))

    err = lax.fori_loop(0, n_chunks, body, jnp.zeros((1, 1), jnp.float32))
    err_ref[...] = err.reshape(1, 1, 1, 1)


def _largest_tile(total, want):
    """Largest multiple of 128 that divides `total` and is <= `want`."""
    best = 128
    d = 128
    limit = min(want, total)
    while d <= limit:
        if total % d == 0:
            best = d
        d += 128
    return best


@functools.partial(jax.jit, static_argnames=("beta", "tile_t", "chunk_t"))
def quantizer_wave_forward(x, embedding, *, beta, tile_t=4096, chunk_t=256):
    """x: (B, C, T) with C == latent_dim.  embedding: (K, D) codebook."""
    B, C, T = x.shape
    K, D = embedding.shape
    assert C == D, "channel dim must equal latent_dim"
    assert D % 8 == 0, "latent_dim must be a multiple of 8 (f32 sublane tiling)"
    assert K % 8 == 0, "codebook_size must be a multiple of 8"
    assert T % 128 == 0, "T must be a multiple of 128"

    # Pick the largest tile (multiple of 128) dividing T, capped at `tile_t`.
    tile_t = _largest_tile(T, min(tile_t, T))
    nt = T // tile_t
    # v7x: keep >= 2 parallel grid steps so both TensorCores get work.
    if B * nt < 2 and T >= 256:
        tile_t = _largest_tile(T, T // 2)
        nt = T // tile_t
    chunk_t = _largest_tile(tile_t, min(chunk_t, tile_t))

    # Codebook-side precompute in the wrapper is free ((K, D) is tiny).
    cb = embedding.astype(jnp.float32)
    cb_neg2 = -2.0 * cb
    cb_sq = jnp.sum(cb * cb, axis=-1, keepdims=True)    # (K, 1)

    kernel = functools.partial(_vq_kernel, chunk_t=chunk_t)

    quant, idx, err = pl.pallas_call(
        kernel,
        out_shape=(
            jax.ShapeDtypeStruct((B, C, T), x.dtype),
            jax.ShapeDtypeStruct((B, 1, T), jnp.int32),
            jax.ShapeDtypeStruct((B, nt, 1, 1), jnp.float32),
        ),
        grid_spec=pltpu.PrefetchScalarGridSpec(
            num_scalar_prefetch=0,
            grid=(B, nt),
            in_specs=[
                pl.BlockSpec((1, D, tile_t), lambda b, t: (b, 0, t)),
                pl.BlockSpec((K, D), lambda b, t: (0, 0)),
                pl.BlockSpec((K, D), lambda b, t: (0, 0)),
                pl.BlockSpec((K, 1), lambda b, t: (0, 0)),
            ],
            out_specs=[
                pl.BlockSpec((1, D, tile_t), lambda b, t: (b, 0, t)),
                pl.BlockSpec((1, 1, tile_t), lambda b, t: (b, 0, t)),
                pl.BlockSpec((1, 1, 1, 1), lambda b, t: (b, t, 0, 0)),
            ],
        ),
        compiler_params=pltpu.CompilerParams(
            dimension_semantics=("parallel", "parallel")),
    )(x, cb, cb_neg2, cb_sq)

    mse = jnp.sum(err) / jnp.float32(B * C * T)
    commitment_loss = jnp.float32(beta) * mse   # beta * mse(quant.detach(), x)
    codebook_loss = mse                          # mse(quant, x.detach())

    # Straight-through value x + (quant - x).detach() == quant in the forward pass.
    losses = {"codebook_loss": codebook_loss, "commitment_loss": commitment_loss}
    return quant, losses, idx.reshape(B, T)


if __name__ == "__main__":
    # config (small, consistent with the module)
    codebook_size = 128
    latent_dim = 16
    beta = 0.25
    B, T = 2, 512

    key = jax.random.PRNGKey(0)
    k_x, k_e = jax.random.split(key)
    x = jax.random.normal(k_x, (B, latent_dim, T), dtype=jnp.float32)
    # embedding.weight.data.uniform_(-1/K, 1/K)
    embedding = jax.random.uniform(
        k_e, (codebook_size, latent_dim), dtype=jnp.float32,
        minval=-1.0 / codebook_size, maxval=1.0 / codebook_size)

    quant_out, losses, indices = quantizer_wave_forward(x, embedding, beta=beta)
    jax.block_until_ready((quant_out, losses, indices))

    # lightweight sanity check against a pure-JAX reference
    xf = jnp.transpose(x, (0, 2, 1)).reshape(B * T, latent_dim)
    dist = (jnp.sum(xf**2, -1, keepdims=True)
            + jnp.sum(embedding**2, -1)[None, :]
            - 2.0 * xf @ embedding.T)
    ref_idx = jnp.argmin(dist, axis=-1)
    ref_quant = jnp.transpose(
        embedding[ref_idx].reshape(B, T, latent_dim), (0, 2, 1))
    assert jnp.array_equal(indices.reshape(-1), ref_idx)
    assert jnp.allclose(quant_out, ref_quant, atol=1e-5)
    ref_mse = jnp.mean((ref_quant - x) ** 2)
    assert jnp.allclose(losses["codebook_loss"], ref_mse, atol=1e-5, rtol=1e-4)
    assert jnp.allclose(losses["commitment_loss"], beta * ref_mse, atol=1e-5, rtol=1e-4)

    print("KERNEL_OK")
</pallas_src>

<mosaic_0001>
module attributes {stable_mosaic.version = 11 : i64} {
  func.func @_vq_kernel(%arg0: i32, %arg1: i32, %arg2: memref<1x16x512xf32, #tpu.memory_space<vmem>>, %arg3: memref<128x16xf32, #tpu.memory_space<vmem>>, %arg4: memref<128x16xf32, #tpu.memory_space<vmem>>, %arg5: memref<128x1xf32, #tpu.memory_space<vmem>>, %arg6: memref<1x16x512xf32, #tpu.memory_space<vmem>>, %arg7: memref<1x1x512xi32, #tpu.memory_space<vmem>>, %arg8: memref<1x1x1x1xf32, #tpu.memory_space<vmem>>) attributes {dimension_semantics = [#tpu.dimension_semantics<parallel>, #tpu.dimension_semantics<parallel>], iteration_bounds = array<i64: 2, 1>, scalar_prefetch = 0 : i64, scratch_operands = 0 : i64, tpu.core_type = #tpu.core_type<tc>, window_params = [{transform_indices = @transform_0, window_bounds = array<i64: 1, 16, 512>}, {pipeline_mode = #tpu.pipeline_mode<synchronous>, transform_indices = @transform_1, window_bounds = array<i64: 128, 16>}, {pipeline_mode = #tpu.pipeline_mode<synchronous>, transform_indices = @transform_2, window_bounds = array<i64: 128, 16>}, {pipeline_mode = #tpu.pipeline_mode<synchronous>, transform_indices = @transform_3, window_bounds = array<i64: 128, 1>}, {transform_indices = @transform_4, window_bounds = array<i64: 1, 16, 512>}, {transform_indices = @transform_5, window_bounds = array<i64: 1, 1, 512>}, {transform_indices = @transform_6, window_bounds = array<i64: 1, 1, 1, 1>}]} {
    %c0 = arith.constant 0 : index
    %c0_0 = arith.constant 0 : index
    %0 = vector.load %arg3[%c0, %c0_0] : memref<128x16xf32, #tpu.memory_space<vmem>>, vector<128x16xf32>
    %c0_1 = arith.constant 0 : index
    %c0_2 = arith.constant 0 : index
    %1 = vector.load %arg4[%c0_1, %c0_2] : memref<128x16xf32, #tpu.memory_space<vmem>>, vector<128x16xf32>
    %c0_3 = arith.constant 0 : index
    %c0_4 = arith.constant 0 : index
    %2 = vector.load %arg5[%c0_3, %c0_4] : memref<128x1xf32, #tpu.memory_space<vmem>>, vector<128x1xf32>
    %cst = arith.constant 0.000000e+00 : f32
    %3 = vector.broadcast %cst : f32 to vector<1x1xf32>
    %c0_i32 = arith.constant 0 : i32
    %c2_i32 = arith.constant 2 : i32
    %4 = arith.addi %c0_i32, %c2_i32 : i32
    %c1_i32 = arith.constant 1 : i32
    %5 = scf.for %arg9 = %c0_i32 to %4 step %c1_i32 iter_args(%arg10 = %3) -> (vector<1x1xf32>)  : i32 {
      %c256_i32 = arith.constant 256 : i32
      %8 = arith.muli %arg9, %c256_i32 : i32
      %9 = tpu.assume_multiple %8, 256 : i32
      %c0_10 = arith.constant 0 : index
      %c0_11 = arith.constant 0 : index
      %10 = arith.index_cast %9 : i32 to index
      %11 = vector.load %arg2[%c0_10, %c0_11, %10] : memref<1x16x512xf32, #tpu.memory_space<vmem>>, vector<1x16x256xf32>
      %12 = vector.shape_cast %11 : vector<1x16x256xf32> to vector<16x256xf32>
      %cst_12 = arith.constant dense<0.000000e+00> : vector<128x256xf32>
      %13 = tpu.matmul %1, %12, %cst_12 {dimension_numbers = #tpu.dot_dimension_numbers<[1], [0], [0], [1], [0, 0, 1, 1], [], []>} : vector<128x16xf32>, vector<16x256xf32>, vector<128x256xf32> -> vector<128x256xf32>
      %14 = vector.broadcast %2 : vector<128x1xf32> to vector<128x256xf32>
      %15 = arith.addf %14, %13 : vector<128x256xf32>
      %16 = tpu.iota {dimensions = array<i32: 0>} : vector<128x256xi32>
      %cst_13 = arith.constant dense<0x7F800000> : vector<256xf32>
      %17 = vector.multi_reduction <minimumf>, %15, %cst_13 [0] : vector<128x256xf32> to vector<256xf32>
      %18 = vector.shape_cast %17 : vector<256xf32> to vector<1x256xf32>
      %19 = vector.broadcast %18 : vector<1x256xf32> to vector<128x256xf32>
      %20 = arith.cmpf oeq, %15, %19 : vector<128x256xf32>
      %c128_i32 = arith.constant 128 : i32
      %21 = vector.broadcast %c128_i32 : i32 to vector<128x256xi32>
      %22 = arith.select %20, %16, %21 : vector<128x256xi1>, vector<128x256xi32>
      %cst_14 = arith.constant dense<2147483647> : vector<256xi32>
      %23 = vector.multi_reduction <minsi>, %22, %cst_14 [0] : vector<128x256xi32> to vector<256xi32>
      %24 = vector.shape_cast %23 : vector<256xi32> to vector<1x256xi32>
      %25 = vector.broadcast %24 : vector<1x256xi32> to vector<128x256xi32>
      %26 = arith.cmpi eq, %22, %25 : vector<128x256xi32>
      %27 = arith.extui %26 : vector<128x256xi1> to vector<128x256xi32>
      %28 = arith.sitofp %27 : vector<128x256xi32> to vector<128x256xf32>
      %cst_15 = arith.constant dense<0.000000e+00> : vector<16x256xf32>
      %29 = tpu.matmul %0, %28, %cst_15 {dimension_numbers = #tpu.dot_dimension_numbers<[0], [0], [1], [1], [0, 1, 1, 1], [], []>} : vector<128x16xf32>, vector<128x256xf32>, vector<16x256xf32> -> vector<16x256xf32>
      %c0_16 = arith.constant 0 : index
      %c0_17 = arith.constant 0 : index
      %30 = arith.index_cast %9 : i32 to index
      %31 = vector.load %arg6[%c0_16, %c0_17, %30] : memref<1x16x512xf32, #tpu.memory_space<vmem>>, vector<1x16x256xf32>
      %32 = vector.shape_cast %31 : vector<1x16x256xf32> to vector<16x256xf32>
      %33 = vector.shape_cast %29 : vector<16x256xf32> to vector<1x16x256xf32>
      tpu.vector_store %arg6[%c0_16, %c0_17, %30], %33 {strides = array<i32>} : memref<1x16x512xf32, #tpu.memory_space<vmem>>, vector<1x16x256xf32>,
      %c0_18 = arith.constant 0 : index
      %c0_19 = arith.constant 0 : index
      %34 = arith.index_cast %9 : i32 to index
      %35 = vector.load %arg7[%c0_18, %c0_19, %34] : memref<1x1x512xi32, #tpu.memory_space<vmem>>, vector<1x1x256xi32>
      %36 = vector.shape_cast %35 : vector<1x1x256xi32> to vector<1x256xi32>
      %37 = vector.shape_cast %24 : vector<1x256xi32> to vector<1x1x256xi32>
      tpu.vector_store %arg7[%c0_18, %c0_19, %34], %37 {strides = array<i32>} : memref<1x1x512xi32, #tpu.memory_space<vmem>>, vector<1x1x256xi32>,
      %38 = arith.mulf %12, %12 : vector<16x256xf32>
      %39 = vector.shape_cast %38 : vector<16x256xf32> to vector<1x16x256xf32>
      %cst_20 = arith.constant dense<0.000000e+00> : vector<1xf32>
      %40 = vector.multi_reduction <add>, %39, %cst_20 [1, 2] : vector<1x16x256xf32> to vector<1xf32>
      %41 = vector.shape_cast %40 : vector<1xf32> to vector<1x1x1xf32>
      %42 = vector.extract %41[0, 0, 0] : f32 from vector<1x1x1xf32>
      %43 = vector.shape_cast %18 : vector<1x256xf32> to vector<1x1x256xf32>
      %cst_21 = arith.constant dense<0.000000e+00> : vector<1xf32>
      %44 = vector.multi_reduction <add>, %43, %cst_21 [1, 2] : vector<1x1x256xf32> to vector<1xf32>
      %45 = vector.shape_cast %44 : vector<1xf32> to vector<1x1x1xf32>
      %46 = vector.extract %45[0, 0, 0] : f32 from vector<1x1x1xf32>
      %47 = arith.addf %42, %46 : f32
      %48 = vector.broadcast %47 : f32 to vector<1x1xf32>
      %49 = arith.addf %arg10, %48 : vector<1x1xf32>
      scf.yield %49 : vector<1x1xf32>
    }
    %c2_i32_5 = arith.constant 2 : i32
    %6 = vector.shape_cast %5 : vector<1x1xf32> to vector<1x1x1x1xf32>
    %c0_6 = arith.constant 0 : index
    %c0_7 = arith.constant 0 : index
    %c0_8 = arith.constant 0 : index
    %c0_9 = arith.constant 0 : index
    %7 = vector.load %arg8[%c0_6, %c0_7, %c0_8, %c0_9] : memref<1x1x1x1xf32, #tpu.memory_space<vmem>>, vector<1x1x1x1xf32>
    tpu.vector_store %arg8[%c0_6, %c0_7, %c0_8, %c0_9], %6 {strides = array<i32>} : memref<1x1x1x1xf32, #tpu.memory_space<vmem>>, vector<1x1x1x1xf32>,
    return
  }
  func.func @transform_0(%arg0: i32, %arg1: i32) -> (i32, i32, i32) {
    %c0_i32 = arith.constant 0 : i32
    %c0_i32_0 = arith.constant 0 : i32
    return %arg0, %c0_i32, %arg1 : i32, i32, i32
  }
  func.func @transform_1(%arg0: i32, %arg1: i32) -> (i32, i32) {
    %c0_i32 = arith.constant 0 : i32
    %c0_i32_0 = arith.constant 0 : i32
    %c0_i32_1 = arith.constant 0 : i32
    return %c0_i32, %c0_i32_0 : i32, i32
  }
  func.func @transform_2(%arg0: i32, %arg1: i32) -> (i32, i32) {
    %c0_i32 = arith.constant 0 : i32
    %c0_i32_0 = arith.constant 0 : i32
    %c0_i32_1 = arith.constant 0 : i32
    return %c0_i32, %c0_i32_0 : i32, i32
  }
  func.func @transform_3(%arg0: i32, %arg1: i32) -> (i32, i32) {
    %c0_i32 = arith.constant 0 : i32
    %c0_i32_0 = arith.constant 0 : i32
    %c0_i32_1 = arith.constant 0 : i32
    return %c0_i32, %c0_i32_0 : i32, i32
  }
  func.func @transform_4(%arg0: i32, %arg1: i32) -> (i32, i32, i32) {
    %c0_i32 = arith.constant 0 : i32
    %c0_i32_0 = arith.constant 0 : i32
    return %arg0, %c0_i32, %arg1 : i32, i32, i32
  }
  func.func @transform_5(%arg0: i32, %arg1: i32) -> (i32, i32, i32) {
    %c0_i32 = arith.constant 0 : i32
    %c0_i32_0 = arith.constant 0 : i32
    return %arg0, %c0_i32, %arg1 : i32, i32, i32
  }
  func.func @transform_6(%arg0: i32, %arg1: i32) -> (i32, i32, i32, i32) {
    %c0_i32 = arith.constant 0 : i32
    %c0_i32_0 = arith.constant 0 : i32
    %c0_i32_1 = arith.constant 0 : i32
    return %arg0, %arg1, %c0_i32, %c0_i32_0 : i32, i32, i32, i32
  }
}

</mosaic_0001>

<llo_original>
// kernel: quantizer_wave_forward.1
$region0: #{quantizer_wave_forward.1}
  #allocation0 [shape = 'u32[]', space=smem, size = 0x4, offset = 0x4, fixed_abs, tag = 'smem constant byte address 0x4 - core index']
  #allocation1 [shape = 'u32[144,128]{1,0:T(1,128)}', space=vmem, size = 0x12000, scoped, tag = 'internal scratch']
  %s0 = inlined_call_operand.vmem [shape: f32[2,16,512], index: 0, kind: input, shape index: {}]
  %s1 = inlined_call_operand.vmem [shape: f32[128,16], index: 1, kind: input, shape index: {}]
  %s2 = inlined_call_operand.vmem [shape: f32[128,16], index: 2, kind: input, shape index: {}]
  %s3 = inlined_call_operand.vmem [shape: f32[128,1], index: 3, kind: input, shape index: {}]
  %s4 = inlined_call_operand.hbm [shape: f32[2,16,512], index: 4, kind: output, shape index: {0}]
  %s5 = inlined_call_operand.vmem [shape: s32[2,1,512], index: 5, kind: output, shape index: {1}]
  %s6 = inlined_call_operand.vmem [shape: f32[2,1,1,1], index: 6, kind: output, shape index: {2}]
  %7 = xla_tuple %s4, %s5, %s6
  %s8 = sld [smem:[#allocation0]]
  $region72: #{quantizer_wave_forward.1} parent=0
    _
  %s10 = ssub.s32 1, %s8
  %s11 = scalar_select 0, %s10, %s8
  $region1: #{quantizer_wave_forward.1} parent=0
    #allocation2 [shape = 'u8[65536]{0}', space=vmem, size = 0x10000, scoped, tag = 'output window, operand 0']
    #allocation3 [shape = 's32[2]{0}', space=sflag, size = 0x8, scoped, tag = 'scoped memory for quantizer_wave_forward.1']
    %12 = vsyncpa [#allocation3], 0
    %s13 = scalar_lea.sflag [#allocation3], 1
    %14 = vsyncpa %s13, 0
    loop: start=0, step=1, limit=4
    $region2: #{quantizer_wave_forward.1} parent=1 // loop_pre_header
      _
    $region3: #{quantizer_wave_forward.1} parent=1 // loop_header
      %s16 = sphi 0, %s20
      %p17 = scmp.ge.s32.totalorder %s16, 4
      %s23 = sphi 0, %s35
      %s24 = sphi 0, %s31
      %s25 = sphi 0, %s23
      %s26 = sphi 0, %s24
      %s27 = sphi 0, %s25
      %s28 = sphi 0, %s26
      %s40 = sphi 0, %s42
      %s43 = sphi 0, %s40
      %s44 = sphi 0, %s43
      %s60 = sphi 0, %s44
      %s64 = sphi 0, %s64
      %s66 = sphi 0, %s64
      %s67 = sphi 0, %s66
      %s81 = sphi 0, %s67
      %s85 = sphi 0, %s85
      %s87 = sphi 0, %s85
      %s88 = sphi 0, %s87
      %s102 = sphi 0, %s88
      %s106 = sphi 0, %s106
      %s108 = sphi 0, %s106
      %s109 = sphi 0, %s108
      %s123 = sphi 0, %s109
      %s131 = sphi 0, %s133
      %s134 = sphi 0, %s131
      %s135 = sphi 0, %s134
      %s151 = sphi 0, %s135
      %s159 = sphi 0, %s161
      %s162 = sphi 0, %s159
      %s163 = sphi 0, %s162
      %s179 = sphi 0, %s163
      %s187 = sphi 0, %s189
      %s190 = sphi 0, %s187
      %s191 = sphi 0, %s190
      %s207 = sphi 0, %s191
    $region4: #{quantizer_wave_forward.1} parent=1 // loop_header_branch
      %19 = sbr.rel (%p17) target = $region8
    $region5: #{quantizer_wave_forward.1} parent=1 // loop_body
      %s21 = ssub.s32 %s16, 1
      %s22 = ssub.s32 %s16, 2
      %s29 = sadd.s32 1, %s24
      %p30 = scmp.ge.s32.totalorder %s29, 1
      %s31 = scalar_select %p30, 0, %s29
      %s32 = sadd.s32 1, %s23
      %s33 = scalar_select %p30, %s32, %s23
      %p34 = scmp.ge.s32.totalorder %s33, 2
      %s35 = scalar_select %p34, 0, %s33
      %s36 = ssub.s32 %s23, %s35
      %s37 = ssub.s32 %s24, %s31
      %s38 = sor.u32 %s36, %s37
      %p39 = scmp.eq.s32.totalorder %s38, 0
      %s41 = sadd.s32 %s40, 1
      %s42 = scalar_select %p39, %s40, %s41
      %p45 = pneg %p39
      %p46 = scmp.eq.s32.totalorder %s16, 1
      %p47 = por %p45, %p46
      %p48 = scmp.ne.s32.totalorder %s40, %s43
      %p49 = scmp.eq.s32.totalorder %s16, 0
      %p50 = por %p48, %p49
      %p51 = scmp.ne.s32.totalorder %s40, %s43
      %p52 = scmp.eq.s32.totalorder %s21, 1
      %p53 = por %p51, %p52
      %p54 = scmp.ne.s32.totalorder %s43, %s44
      %p55 = scmp.eq.s32.totalorder %s21, 0
      %p56 = por %p54, %p55
      %p57 = scmp.ne.s32.totalorder %s43, %s44
      %p58 = scmp.eq.s32.totalorder %s22, 1
      %p59 = por %p57, %p58
      %p61 = scmp.ne.s32.totalorder %s44, %s60
      %p62 = scmp.eq.s32.totalorder %s22, 0
      %p63 = por %p61, %p62
      %s65 = sadd.s32 %s64, 1
      %p68 = scmp.eq.s32.totalorder %s16, 1
      %p69 = scmp.ne.s32.totalorder %s64, %s66
      %p70 = scmp.eq.s32.totalorder %s16, 0
      %p71 = por %p69, %p70
      %p72 = scmp.ne.s32.totalorder %s64, %s66
      %p73 = scmp.eq.s32.totalorder %s21, 1
      %p74 = por %p72, %p73
      %p75 = scmp.ne.s32.totalorder %s66, %s67
      %p76 = scmp.eq.s32.totalorder %s21, 0
      %p77 = por %p75, %p76
      %p78 = scmp.ne.s32.totalorder %s66, %s67
      %p79 = scmp.eq.s32.totalorder %s22, 1
      %p80 = por %p78, %p79
      %p82 = scmp.ne.s32.totalorder %s67, %s81
      %p83 = scmp.eq.s32.totalorder %s22, 0
      %p84 = por %p82, %p83
      %s86 = sadd.s32 %s85, 1
      %p89 = scmp.eq.s32.totalorder %s16, 1
      %p90 = scmp.ne.s32.totalorder %s85, %s87
      %p91 = scmp.eq.s32.totalorder %s16, 0
      %p92 = por %p90, %p91
      %p93 = scmp.ne.s32.totalorder %s85, %s87
      %p94 = scmp.eq.s32.totalorder %s21, 1
      %p95 = por %p93, %p94
      %p96 = scmp.ne.s32.totalorder %s87, %s88
      %p97 = scmp.eq.s32.totalorder %s21, 0
      %p98 = por %p96, %p97
      %p99 = scmp.ne.s32.totalorder %s87, %s88
      %p100 = scmp.eq.s32.totalorder %s22, 1
      %p101 = por %p99, %p100
      %p103 = scmp.ne.s32.totalorder %s88, %s102
      %p104 = scmp.eq.s32.totalorder %s22, 0
      %p105 = por %p103, %p104
      %s107 = sadd.s32 %s106, 1
      %p110 = scmp.eq.s32.totalorder %s16, 1
      %p111 = scmp.ne.s32.totalorder %s106, %s108
      %p112 = scmp.eq.s32.totalorder %s16, 0
      %p113 = por %p111, %p112
      %p114 = scmp.ne.s32.totalorder %s106, %s108
      %p115 = scmp.eq.s32.totalorder %s21, 1
      %p116 = por %p114, %p115
      %p117 = scmp.ne.s32.totalorder %s108, %s109
      %p118 = scmp.eq.s32.totalorder %s21, 0
      %p119 = por %p117, %p118
      %p120 = scmp.ne.s32.totalorder %s108, %s109
      %p121 = scmp.eq.s32.totalorder %s22, 1
      %p122 = por %p120, %p121
      %p124 = scmp.ne.s32.totalorder %s109, %s123
      %p125 = scmp.eq.s32.totalorder %s22, 0
      %p126 = por %p124, %p125
      %s127 = ssub.s32 %s23, %s35
      %s128 = ssub.s32 %s24, %s31
      %s129 = sor.u32 %s127, %s128
      %p130 = scmp.eq.s32.totalorder %s129, 0
      %s132 = sadd.s32 %s131, 1
      %s133 = scalar_select %p130, %s131, %s132
      %p136 = pneg %p130
      %p137 = scmp.eq.s32.totalorder %s16, 1
      %p138 = por %p136, %p137
      %p139 = scmp.ne.s32.totalorder %s131, %s134
      %p140 = scmp.eq.s32.totalorder %s16, 0
      %p141 = por %p139, %p140
      %p142 = scmp.ne.s32.totalorder %s131, %s134
      %p143 = scmp.eq.s32.totalorder %s21, 1
      %p144 = por %p142, %p143
      %p145 = scmp.ne.s32.totalorder %s134, %s135
      %p146 = scmp.eq.s32.totalorder %s21, 0
      %p147 = por %p145, %p146
      %p148 = scmp.ne.s32.totalorder %s134, %s135
      %p149 = scmp.eq.s32.totalorder %s22, 1
      %p150 = por %p148, %p149
      %p152 = scmp.ne.s32.totalorder %s135, %s151
      %p153 = scmp.eq.s32.totalorder %s22, 0
      %p154 = por %p152, %p153
      %s155 = ssub.s32 %s23, %s35
      %s156 = ssub.s32 %s24, %s31
      %s157 = sor.u32 %s155, %s156
      %p158 = scmp.eq.s32.totalorder %s157, 0
      %s160 = sadd.s32 %s159, 1
      %s161 = scalar_select %p158, %s159, %s160
      %p164 = pneg %p158
      %p165 = scmp.eq.s32.totalorder %s16, 1
      %p166 = por %p164, %p165
      %p167 = scmp.ne.s32.totalorder %s159, %s162
      %p168 = scmp.eq.s32.totalorder %s16, 0
      %p169 = por %p167, %p168
      %p170 = scmp.ne.s32.totalorder %s159, %s162
      %p171 = scmp.eq.s32.totalorder %s21, 1
      %p172 = por %p170, %p171
      %p173 = scmp.ne.s32.totalorder %s162, %s163
      %p174 = scmp.eq.s32.totalorder %s21, 0
      %p175 = por %p173, %p174
      %p176 = scmp.ne.s32.totalorder %s162, %s163
      %p177 = scmp.eq.s32.totalorder %s22, 1
      %p178 = por %p176, %p177
      %p180 = scmp.ne.s32.totalorder %s163, %s179
      %p181 = scmp.eq.s32.totalorder %s22, 0
      %p182 = por %p180, %p181
      %s183 = ssub.s32 %s23, %s35
      %s184 = ssub.s32 %s24, %s31
      %s185 = sor.u32 %s183, %s184
      %p186 = scmp.eq.s32.totalorder %s185, 0
      %s188 = sadd.s32 %s187, 1
      %s189 = scalar_select %p186, %s187, %s188
      %p192 = pneg %p186
      %p193 = scmp.eq.s32.totalorder %s16, 1
      %p194 = por %p192, %p193
      %p195 = scmp.ne.s32.totalorder %s187, %s190
      %p196 = scmp.eq.s32.totalorder %s16, 0
      %p197 = por %p195, %p196
      %p198 = scmp.ne.s32.totalorder %s187, %s190
      %p199 = scmp.eq.s32.totalorder %s21, 1
      %p200 = por %p198, %p199
      %p201 = scmp.ne.s32.totalorder %s190, %s191
      %p202 = scmp.eq.s32.totalorder %s21, 0
      %p203 = por %p201, %p202
      %p204 = scmp.ne.s32.totalorder %s190, %s191
      %p205 = scmp.eq.s32.totalorder %s22, 1
      %p206 = por %p204, %p205
      %p208 = scmp.ne.s32.totalorder %s191, %s207
      %p209 = scmp.eq.s32.totalorder %s22, 0
      %p210 = por %p208, %p209
      %p211 = scmp.le.s32.totalorder 1, %s16
      %p212 = scmp.lt.s32.totalorder %s16, 3
      %p213 = pnand %p211, %p212
      %p214 = pneg %p213
      // Predicated region
      $region9: #{quantizer_wave_forward.1} parent=5 // pred_check
        _
      $region10: #{quantizer_wave_forward.1} parent=5 // pred_check_branch
        %216 = sbr.rel (%p213) target = $region12
      $region11: #{quantizer_wave_forward.1} parent=5 // pred_region
        %s217 = ssub.s32 %s16, 1
        // Predicated region
        $region13: #{quantizer_wave_forward.1} parent=11 // pred_check
          %p218 = pneg %p77
        $region14: #{quantizer_wave_forward.1} parent=11 // pred_check_branch
          %220 = sbr.rel (%p218) target = $region16
        $region15: #{quantizer_wave_forward.1} parent=11 // pred_region
          _
        $region16: #{quantizer_wave_forward.1} parent=11 // pred_fallthru
          _
        // Predicated region
        $region17: #{quantizer_wave_forward.1} parent=11 // pred_check
          %p221 = pneg %p98
        $region18: #{quantizer_wave_forward.1} parent=11 // pred_check_branch
          %223 = sbr.rel (%p221) target = $region20
        $region19: #{quantizer_wave_forward.1} parent=11 // pred_region
          _
        $region20: #{quantizer_wave_forward.1} parent=11 // pred_fallthru
          _
        // Predicated region
        $region21: #{quantizer_wave_forward.1} parent=11 // pred_check
          %p224 = pneg %p119
        $region22: #{quantizer_wave_forward.1} parent=11 // pred_check_branch
          %226 = sbr.rel (%p224) target = $region24
        $region23: #{quantizer_wave_forward.1} parent=11 // pred_region
          _
        $region24: #{quantizer_wave_forward.1} parent=11 // pred_fallthru
          _
      $region12: #{quantizer_wave_forward.1} parent=5 // pred_fallthru
        _
      %p227 = scmp.lt.s32.totalorder %s16, 2
      // Predicated region
      $region25: #{quantizer_wave_forward.1} parent=5 // pred_check
        %p228 = pneg %p227
      $region26: #{quantizer_wave_forward.1} parent=5 // pred_check_branch
        %230 = sbr.rel (%p228) target = $region28
      $region27: #{quantizer_wave_forward.1} parent=5 // pred_region
        // Predicated region
        $region29: #{quantizer_wave_forward.1} parent=27 // pred_check
          %p231 = pneg %p50
        $region30: #{quantizer_wave_forward.1} parent=27 // pred_check_branch
          %233 = sbr.rel (%p231) target = $region32
        $region31: #{quantizer_wave_forward.1} parent=27 // pred_region
          %s234 = smul.u32 4, %s24
          %p235 = scmp.lt.s32.totalorder %s23, 1
          %s236 = scalar_select %p235, %s23, 1
          %p237 = scmp.lt.s32.totalorder %s234, 3
          %s238 = scalar_select %p237, %s234, 3
          %s239 = smul.addr %s236, 8
          %s240 = sadd.s32 %s238, %s239
          %s241 = smul.addr %s240, 8
          %s242 = scalar_lea.vmem %s0, %s241
          %s243 = smul.u32 4, %s24
        $region32: #{quantizer_wave_forward.1} parent=27 // pred_fallthru
          _
      $region28: #{quantizer_wave_forward.1} parent=5 // pred_fallthru
        _
      %p244 = scmp.le.s32.totalorder 1, %s16
      %p245 = scmp.lt.s32.totalorder %s16, 3
      %p246 = pnand %p244, %p245
      %p247 = pneg %p246
      // Predicated region
      $region33: #{quantizer_wave_forward.1} parent=5 // pred_check
        _
      $region34: #{quantizer_wave_forward.1} parent=5 // pred_check_branch
        %249 = sbr.rel (%p246) target = $region36
      $region35: #{quantizer_wave_forward.1} parent=5 // pred_region
        %s250 = ssub.s32 %s16, 1
        %s251 = smul.u32 4, %s26
        %p252 = scmp.lt.s32.totalorder %s25, 1
        %s253 = scalar_select %p252, %s25, 1
        %p254 = scmp.lt.s32.totalorder %s251, 3
        %s255 = scalar_select %p254, %s251, 3
        %s256 = smul.addr %s253, 8
        %s257 = sadd.s32 %s255, %s256
        %s258 = smul.addr %s257, 8
        %s259 = scalar_lea.vmem %s0, %s258
        %p260 = pneg %p56
        %p261 = pneg %p53
        %p262 = pneg %p77
        %p263 = pneg %p74
        %p264 = pneg %p98
        %p265 = pneg %p95
        %p266 = pneg %p119
        %p267 = pneg %p116
        %p268 = pneg %p147
        %p269 = pneg %p144
        %s270 = sand.u32 %s134, 1
        %s271 = scalar_lea.sflag [#allocation3], %s270
        %s272 = sand.u32 %s134, 1
        %s273 = smul.addr %s272, 64
        %s274 = scalar_lea.vmem [#allocation2], %s273
        %p275 = pneg %p175
        %p276 = pneg %p172
        %s277 = smul.u32 4, %s26
        %p278 = scmp.lt.s32.totalorder %s25, 1
        %s279 = scalar_select %p278, %s25, 1
        %p280 = scmp.lt.s32.totalorder %s277, 3
        %s281 = scalar_select %p280, %s277, 3
        %s282 = smul.addr %s279, 4
        %s283 = sadd.s32 %s281, %s282
        %s284 = scalar_lea.vmem %s5, %s283
        %p285 = pneg %p203
        %p286 = pneg %p200
        %p287 = scmp.lt.s32.totalorder %s25, 1
        %s288 = scalar_select %p287, %s25, 1
        %p289 = scmp.lt.s32.totalorder %s26, 0
        %s290 = scalar_select %p289, %s26, 0
        %s291 = sadd.s32 %s290, %s288
        %s292 = scalar_lea.vmem %s6, %s291
        %s293 = smul.u32 4, %s26
        %p294 = scmp.lt.s32.totalorder %s25, 1
        %s295 = scalar_select %p294, %s25, 1
        %p296 = scmp.lt.s32.totalorder %s293, 3
        %s297 = scalar_select %p296, %s293, 3
        %s298 = smul.addr %s295, 8
        %s299 = sadd.s32 %s297, %s298
        %s300 = smul.addr %s299, 8
        %s301 = scalar_lea.vmem %s0, %s300
        %s302 = smul.u32 4, %s26
        %s303 = smul.u32 4, %s26
        %s304 = smul.u32 4, %s26
        %p305 = scmp.lt.s32.totalorder %s25, 1
        %s306 = scalar_select %p305, %s25, 1
        %p307 = scmp.lt.s32.totalorder %s304, 3
        %s308 = scalar_select %p307, %s304, 3
        %s309 = smul.addr %s306, 4
        %s310 = sadd.s32 %s308, %s309
        %s311 = scalar_lea.vmem %s5, %s310
        %s312 = smul.u32 4, %s26
        %p313 = scmp.lt.s32.totalorder %s25, 1
        %s314 = scalar_select %p313, %s25, 1
        %p315 = scmp.lt.s32.totalorder %s26, 0
        %s316 = scalar_select %p315, %s26, 0
        %s317 = sadd.s32 %s316, %s314
        %s318 = scalar_lea.vmem %s6, %s317
        %v319 = vld [vmem:[%s1] sm:$0xff]
        %v320 = vld [vmem:[%s1 + $0x8] sm:$0xff]
        %v321 = vld [vmem:[%s1 + $0x10] sm:$0xff]
        %v322 = vld [vmem:[%s1 + $0x18] sm:$0xff]
        %v323 = vld [vmem:[%s1 + $0x20] sm:$0xff]
        %v324 = vld [vmem:[%s1 + $0x28] sm:$0xff]
        %v325 = vld [vmem:[%s1 + $0x30] sm:$0xff]
        %v326 = vld [vmem:[%s1 + $0x38] sm:$0xff]
        %v327 = vld [vmem:[%s1 + $0x40] sm:$0xff]
        %v328 = vld [vmem:[%s1 + $0x48] sm:$0xff]
        %v329 = vld [vmem:[%s1 + $0x50] sm:$0xff]
        %v330 = vld [vmem:[%s1 + $0x58] sm:$0xff]
        %v331 = vld [vmem:[%s1 + $0x60] sm:$0xff]
        %v332 = vld [vmem:[%s1 + $0x68] sm:$0xff]
        %v333 = vld [vmem:[%s1 + $0x70] sm:$0xff]
        %v334 = vld [vmem:[%s1 + $0x78] sm:$0xff]
        %v335 = vld [vmem:[%s2] sm:$0xff]
        %v336 = vld [vmem:[%s2 + $0x8] sm:$0xff]
        %v337 = vld [vmem:[%s2 + $0x10] sm:$0xff]
        %v338 = vld [vmem:[%s2 + $0x18] sm:$0xff]
        %v339 = vld [vmem:[%s2 + $0x20] sm:$0xff]
        %v340 = vld [vmem:[%s2 + $0x28] sm:$0xff]
        %v341 = vld [vmem:[%s2 + $0x30] sm:$0xff]
        %v342 = vld [vmem:[%s2 + $0x38] sm:$0xff]
        %v343 = vld [vmem:[%s2 + $0x40] sm:$0xff]
        %v344 = vld [vmem:[%s2 + $0x48] sm:$0xff]
        %v345 = vld [vmem:[%s2 + $0x50] sm:$0xff]
        %v346 = vld [vmem:[%s2 + $0x58] sm:$0xff]
        %v347 = vld [vmem:[%s2 + $0x60] sm:$0xff]
        %v348 = vld [vmem:[%s2 + $0x68] sm:$0xff]
        %v349 = vld [vmem:[%s2 + $0x70] sm:$0xff]
        %v350 = vld [vmem:[%s2 + $0x78] sm:$0xff]
        %v351 = vld [vmem:[%s3] sm:$0xff]
        %v352 = vld [vmem:[%s3 + $0x8] sm:$0xff]
        %v353 = vld [vmem:[%s3 + $0x10] sm:$0xff]
        %v354 = vld [vmem:[%s3 + $0x18] sm:$0xff]
        %v355 = vld [vmem:[%s3 + $0x20] sm:$0xff]
        %v356 = vld [vmem:[%s3 + $0x28] sm:$0xff]
        %v357 = vld [vmem:[%s3 + $0x30] sm:$0xff]
        %v358 = vld [vmem:[%s3 + $0x38] sm:$0xff]
        %v359 = vld [vmem:[%s3 + $0x40] sm:$0xff]
        %v360 = vld [vmem:[%s3 + $0x48] sm:$0xff]
        %v361 = vld [vmem:[%s3 + $0x50] sm:$0xff]
        %v362 = vld [vmem:[%s3 + $0x58] sm:$0xff]
        %v363 = vld [vmem:[%s3 + $0x60] sm:$0xff]
        %v364 = vld [vmem:[%s3 + $0x68] sm:$0xff]
        %v365 = vld [vmem:[%s3 + $0x70] sm:$0xff]
        %v366 = vld [vmem:[%s3 + $0x78] sm:$0xff]
        loop: start=0, step=1, limit=2
        $region37: #{quantizer_wave_forward.1} parent=35 // loop_pre_header
          _
        $region38: #{quantizer_wave_forward.1} parent=35 // loop_header
          %s368 = sphi 0, %s372
          %p369 = scmp.ge.s32.totalorder %s368, 2
          %v373 = vphi 0.0, %v1169
        $region39: #{quantizer_wave_forward.1} parent=35 // loop_header_branch
          %371 = sbr.rel (%p369) target = $region43
        $region40: #{quantizer_wave_forward.1} parent=35 // loop_body
          %s374 = smul.u32 %s368, 256
          %s375 = sshra.s32 %s374, 7
          %s376 = sand.u32 %s374, 127
          %s377 = smul.addr %s375, 8
          %s378 = scalar_lea.vmem %s301, %s377
          %v379 = vld [vmem:[%s378] sm:$0xff]
          %v380 = vld [vmem:[%s378 + $0x8] sm:$0xff]
          %v381 = vld [vmem:[%s378 + $0x20] sm:$0xff]
          %v382 = vld [vmem:[%s378 + $0x28] sm:$0xff]
          %vm383 = vcmask 130048
          %v385 = vsel %vm383, %v335, 0
          %v388 = vsel %vm383, %v336, 0
          %v391 = vsel %vm383, %v337, 0
          %v394 = vsel %vm383, %v338, 0
          %v397 = vsel %vm383, %v339, 0
          %v400 = vsel %vm383, %v340, 0
          %v403 = vsel %vm383, %v341, 0
          %v406 = vsel %vm383, %v342, 0
          %v409 = vsel %vm383, %v343, 0
          %v412 = vsel %vm383, %v344, 0
          %v415 = vsel %vm383, %v345, 0
          %v418 = vsel %vm383, %v346, 0
          %v421 = vsel %vm383, %v347, 0
          %v424 = vsel %vm383, %v348, 0
          %v427 = vsel %vm383, %v349, 0
          %v430 = vsel %vm383, %v350, 0
          %432 = vmatprep.subr.mxu0 %v380
          %433 = vmatpush1.msra.mxu0 %v379
          %434 = vmatprep.subr.mxu0 %v382
          %435 = vmatpush1.msra.mxu0 %v381
          %436 = vmatprep.subr.mxu0 0.0
          %437 = vmatpush1.msra.mxu0 0.0
          %438 = vmatprep.subr.mxu0 0.0
          %439 = vmatpush1.msra.mxu0 0.0
          %440 = vmatprep.subr.mxu0 0.0
          %441 = vmatpush1.msra.mxu0 0.0
          %442 = vmatprep.subr.mxu0 0.0
          %443 = vmatpush1.msra.mxu0 0.0
          %444 = vmatprep.subr.mxu0 0.0
          %445 = vmatpush1.msra.mxu0 0.0
          %446 = vmatprep.subr.mxu0 0.0
          %447 = vmatpush1.msra.mxu0 0.0
          %448 = vmatprep.subr.mxu0 0.0
          %449 = vmatpush1.msra.mxu0 0.0
          %450 = vmatprep.subr.mxu0 0.0
          %451 = vmatpush1.msra.mxu0 0.0
          %452 = vmatprep.subr.mxu0 0.0
          %453 = vmatpush1.msra.mxu0 0.0
          %454 = vmatprep.subr.mxu0 0.0
          %455 = vmatpush1.msra.mxu0 0.0
          %456 = vmatprep.subr.mxu0 0.0
          %457 = vmatpush1.msra.mxu0 0.0
          %458 = vmatprep.subr.mxu0 0.0
          %459 = vmatpush1.msra.mxu0 0.0
          %460 = vmatprep.subr.mxu0 0.0
          %461 = vmatpush1.msra.mxu0 0.0
          %462 = vmatprep.subr.mxu0 0.0
          %463 = vmatpush1.msra.mxu0 0.0
          %464 = vmatprep.subr.mxu0 0.0
          %465 = vmatpush1.msra.mxu0 0.0
          %466 = vmatprep.subr.mxu0 0.0
          %467 = vmatpush1.msra.mxu0 0.0
          %468 = vmatprep.subr.mxu0 0.0
          %469 = vmatpush1.msra.mxu0 0.0
          %470 = vmatprep.subr.mxu0 0.0
          %471 = vmatpush1.msra.mxu0 0.0
          %472 = vmatprep.subr.mxu0 0.0
          %473 = vmatpush1.msra.mxu0 0.0
          %474 = vmatprep.subr.mxu0 0.0
          %475 = vmatpush1.msra.mxu0 0.0
          %476 = vmatprep.subr.mxu0 0.0
          %477 = vmatpush1.msra.mxu0 0.0
          %478 = vmatprep.subr.mxu0 0.0
          %479 = vmatpush1.msra.mxu0 0.0
          %480 = vmatprep.subr.mxu0 0.0
          %481 = vmatpush1.msra.mxu0 0.0
          %482 = vmatprep.subr.mxu0 0.0
          %483 = vmatpush1.msra.mxu0 0.0
          %484 = vmatprep.subr.mxu0 0.0
          %485 = vmatpush1.msra.mxu0 0.0
          %486 = vmatprep.subr.mxu0 0.0
          %487 = vmatpush1.msra.mxu0 0.0
          %488 = vmatprep.subr.mxu0 0.0
          %489 = vmatpush1.msra.mxu0 0.0
          %490 = vmatprep.subr.mxu0 0.0
          %491 = vmatpush1.msra.mxu0 0.0
          %492 = vmatprep.subr.mxu0 0.0
          %493 = vmatpush1.msra.mxu0 0.0
          %494 = vmatprep.subr.mxu0 0.0
          %495 = vmatpush1.msra.mxu0 0.0
          %496 = vmatprep.mubr.f32.mxu0 0.0
          %497 = vmatmul.mubr.f32.gmra.mrb[0].mxu0 %v385
          %v498 = vpop.f32.mrb[0].mxu0
          %v499 = vadd.f32 0.0, %v498
          %v500 = vpop.f32.mrb[0].mxu0
          %v501 = vadd.f32 0.0, %v500
          %502 = vmatprep.mubr.f32.mxu0 0.0
          %503 = vmatmul.mubr.f32.gmra.mrb[0].mxu0 %v388
          %v504 = vpop.f32.mrb[0].mxu0
          %v505 = vadd.f32 0.0, %v504
          %v506 = vpop.f32.mrb[0].mxu0
          %v507 = vadd.f32 0.0, %v506
          %508 = vmatprep.mubr.f32.mxu0 0.0
          %509 = vmatmul.mubr.f32.gmra.mrb[0].mxu0 %v391
          %v510 = vpop.f32.mrb[0].mxu0
          %v511 = vadd.f32 0.0, %v510
          %v512 = vpop.f32.mrb[0].mxu0
          %v513 = vadd.f32 0.0, %v512
          %514 = vmatprep.mubr.f32.mxu0 0.0
          %515 = vmatmul.mubr.f32.gmra.mrb[0].mxu0 %v394
          %v516 = vpop.f32.mrb[0].mxu0
          %v517 = vadd.f32 0.0, %v516
          %v518 = vpop.f32.mrb[0].mxu0
          %v519 = vadd.f32 0.0, %v518
          %520 = vmatprep.mubr.f32.mxu0 0.0
          %521 = vmatmul.mubr.f32.gmra.mrb[0].mxu0 %v397
          %v522 = vpop.f32.mrb[0].mxu0
          %v523 = vadd.f32 0.0, %v522
          %v524 = vpop.f32.mrb[0].mxu0
          %v525 = vadd.f32 0.0, %v524
          %526 = vmatprep.mubr.f32.mxu0 0.0
          %527 = vmatmul.mubr.f32.gmra.mrb[0].mxu0 %v400
          %v528 = vpop.f32.mrb[0].mxu0
          %v529 = vadd.f32 0.0, %v528
          %v530 = vpop.f32.mrb[0].mxu0
          %v531 = vadd.f32 0.0, %v530
          %532 = vmatprep.mubr.f32.mxu0 0.0
          %533 = vmatmul.mubr.f32.gmra.mrb[0].mxu0 %v403
          %v534 = vpop.f32.mrb[0].mxu0
          %v535 = vadd.f32 0.0, %v534
          %v536 = vpop.f32.mrb[0].mxu0
          %v537 = vadd.f32 0.0, %v536
          %538 = vmatprep.mubr.f32.mxu0 0.0
          %539 = vmatmul.mubr.f32.gmra.mrb[0].mxu0 %v406
          %v540 = vpop.f32.mrb[0].mxu0
          %v541 = vadd.f32 0.0, %v540
          %v542 = vpop.f32.mrb[0].mxu0
          %v543 = vadd.f32 0.0, %v542
          %544 = vmatprep.mubr.f32.mxu0 0.0
          %545 = vmatmul.mubr.f32.gmra.mrb[0].mxu0 %v409
          %v546 = vpop.f32.mrb[0].mxu0
          %v547 = vadd.f32 0.0, %v546
          %v548 = vpop.f32.mrb[0].mxu0
          %v549 = vadd.f32 0.0, %v548
          %550 = vmatprep.mubr.f32.mxu0 0.0
          %551 = vmatmul.mubr.f32.gmra.mrb[0].mxu0 %v412
          %v552 = vpop.f32.mrb[0].mxu0
          %v553 = vadd.f32 0.0, %v552
          %v554 = vpop.f32.mrb[0].mxu0
          %v555 = vadd.f32 0.0, %v554
          %556 = vmatprep.mubr.f32.mxu0 0.0
          %557 = vmatmul.mubr.f32.gmra.mrb[0].mxu0 %v415
          %v558 = vpop.f32.mrb[0].mxu0
          %v559 = vadd.f32 0.0, %v558
          %v560 = vpop.f32.mrb[0].mxu0
          %v561 = vadd.f32 0.0, %v560
          %562 = vmatprep.mubr.f32.mxu0 0.0
          %563 = vmatmul.mubr.f32.gmra.mrb[0].mxu0 %v418
          %v564 = vpop.f32.mrb[0].mxu0
          %v565 = vadd.f32 0.0, %v564
          %v566 = vpop.f32.mrb[0].mxu0
          %v567 = vadd.f32 0.0, %v566
          %568 = vmatprep.mubr.f32.mxu0 0.0
          %569 = vmatmul.mubr.f32.gmra.mrb[0].mxu0 %v421
          %v570 = vpop.f32.mrb[0].mxu0
          %v571 = vadd.f32 0.0, %v570
          %v572 = vpop.f32.mrb[0].mxu0
          %v573 = vadd.f32 0.0, %v572
          %574 = vmatprep.mubr.f32.mxu0 0.0
          %575 = vmatmul.mubr.f32.gmra.mrb[0].mxu0 %v424
          %v576 = vpop.f32.mrb[0].mxu0
          %v577 = vadd.f32 0.0, %v576
          %v578 = vpop.f32.mrb[0].mxu0
          %v579 = vadd.f32 0.0, %v578
          %580 = vmatprep.mubr.f32.mxu0 0.0
          %581 = vmatmul.mubr.f32.gmra.mrb[0].mxu0 %v427
          %v582 = vpop.f32.mrb[0].mxu0
          %v583 = vadd.f32 0.0, %v582
          %v584 = vpop.f32.mrb[0].mxu0
          %v585 = vadd.f32 0.0, %v584
          %586 = vmatprep.mubr.f32.mxu0 0.0
          %587 = vmatmul.mubr.f32.gmra.mrb[0].mxu0 %v430
          %v588 = vpop.f32.mrb[0].mxu0
          %v589 = vadd.f32 0.0, %v588
          %v590 = vpop.f32.mrb[0].mxu0
          %v591 = vadd.f32 0.0, %v590
          %592 = vdwg.mxu0
          %594 = vset.pattern.permute.xlu0 0
          %595 = vperm.xlu0 %594, %v351
          %v596 = vpop.permute.xlu0 %595
          %599 = vset.pattern.permute.xlu0 0
          %600 = vperm.xlu0 %599, %v352
          %v601 = vpop.permute.xlu0 %600
          %604 = vset.pattern.permute.xlu0 0
          %605 = vperm.xlu0 %604, %v353
          %v606 = vpop.permute.xlu0 %605
          %609 = vset.pattern.permute.xlu0 0
          %610 = vperm.xlu0 %609, %v354
          %v611 = vpop.permute.xlu0 %610
          %614 = vset.pattern.permute.xlu0 0
          %615 = vperm.xlu0 %614, %v355
          %v616 = vpop.permute.xlu0 %615
          %619 = vset.pattern.permute.xlu0 0
          %620 = vperm.xlu0 %619, %v356
          %v621 = vpop.permute.xlu0 %620
          %624 = vset.pattern.permute.xlu0 0
          %625 = vperm.xlu0 %624, %v357
          %v626 = vpop.permute.xlu0 %625
          %629 = vset.pattern.permute.xlu0 0
          %630 = vperm.xlu0 %629, %v358
          %v631 = vpop.permute.xlu0 %630
          %634 = vset.pattern.permute.xlu0 0
          %635 = vperm.xlu0 %634, %v359
          %v636 = vpop.permute.xlu0 %635
          %639 = vset.pattern.permute.xlu0 0
          %640 = vperm.xlu0 %639, %v360
          %v641 = vpop.permute.xlu0 %640
          %644 = vset.pattern.permute.xlu0 0
          %645 = vperm.xlu0 %644, %v361
          %v646 = vpop.permute.xlu0 %645
          %649 = vset.pattern.permute.xlu0 0
          %650 = vperm.xlu0 %649, %v362
          %v651 = vpop.permute.xlu0 %650
          %654 = vset.pattern.permute.xlu0 0
          %655 = vperm.xlu0 %654, %v363
          %v656 = vpop.permute.xlu0 %655
          %659 = vset.pattern.permute.xlu0 0
          %660 = vperm.xlu0 %659, %v364
          %v661 = vpop.permute.xlu0 %660
          %664 = vset.pattern.permute.xlu0 0
          %665 = vperm.xlu0 %664, %v365
          %v666 = vpop.permute.xlu0 %665
          %669 = vset.pattern.permute.xlu0 0
          %670 = vperm.xlu0 %669, %v366
          %v671 = vpop.permute.xlu0 %670
          %v673 = vadd.f32 %v596, %v499
          %v674 = vadd.f32 %v596, %v501
          %v675 = vadd.f32 %v601, %v505
          %v676 = vadd.f32 %v601, %v507
          %v677 = vadd.f32 %v606, %v511
          %v678 = vadd.f32 %v606, %v513
          %v679 = vadd.f32 %v611, %v517
          %v680 = vadd.f32 %v611, %v519
          %v681 = vadd.f32 %v616, %v523
          %v682 = vadd.f32 %v616, %v525
          %v683 = vadd.f32 %v621, %v529
          %v684 = vadd.f32 %v621, %v531
          %v685 = vadd.f32 %v626, %v535
          %v686 = vadd.f32 %v626, %v537
          %v687 = vadd.f32 %v631, %v541
          %v688 = vadd.f32 %v631, %v543
          %v689 = vadd.f32 %v636, %v547
          %v690 = vadd.f32 %v636, %v549
          %v691 = vadd.f32 %v641, %v553
          %v692 = vadd.f32 %v641, %v555
          %v693 = vadd.f32 %v646, %v559
          %v694 = vadd.f32 %v646, %v561
          %v695 = vadd.f32 %v651, %v565
          %v696 = vadd.f32 %v651, %v567
          %v697 = vadd.f32 %v656, %v571
          %v698 = vadd.f32 %v656, %v573
          %v699 = vadd.f32 %v661, %v577
          %v700 = vadd.f32 %v661, %v579
          %v701 = vadd.f32 %v666, %v583
          %v702 = vadd.f32 %v666, %v585
          %v703 = vadd.f32 %v671, %v589
          %v704 = vadd.f32 %v671, %v591
          %v705 = vlaneseq
          %v706 = vshrl.u32 %v705, 7
          %v707 = vadd.s32 %v706, 8
          %v708 = vadd.s32 %v706, 16
          %v709 = vadd.s32 %v706, 24
          %v710 = vadd.s32 %v706, 32
          %v711 = vadd.s32 %v706, 40
          %v712 = vadd.s32 %v706, 48
          %v713 = vadd.s32 %v706, 56
          %v714 = vadd.s32 %v706, 64
          %v715 = vadd.s32 %v706, 72
          %v716 = vadd.s32 %v706, 80
          %v717 = vadd.s32 %v706, 88
          %v718 = vadd.s32 %v706, 96
          %v719 = vadd.s32 %v706, 104
          %v720 = vadd.s32 %v706, 112
          %v721 = vadd.s32 %v706, 120
          %v722 = vmin.f32 %v673, %v677
          %v723 = vmin.f32 %v675, %v679
          %v724 = vmin.f32 %v722, %v681
          %v725 = vmin.f32 %v723, %v683
          %v726 = vmin.f32 %v724, %v685
          %v727 = vmin.f32 %v725, %v687
          %v728 = vmin.f32 %v726, %v689
          %v729 = vmin.f32 %v727, %v691
          %v730 = vmin.f32 %v728, %v693
          %v731 = vmin.f32 %v729, %v695
          %v732 = vmin.f32 %v730, %v697
          %v733 = vmin.f32 %v731, %v699
          %v734 = vmin.f32 %v732, %v701
          %v735 = vmin.f32 %v733, %v703
          %v736 = vmin.f32 %v734, %v735
          %v737 = vrot.slane %v736, 4
          %v738 = vmin.f32 %v736, %v737
          %v739 = vrot.slane %v738, 2
          %v740 = vmin.f32 %v738, %v739
          %v741 = vrot.slane %v740, 1
          %v742 = vmin.f32 %v740, %v741
          %v743 = vmin.f32 %v674, %v678
          %v744 = vmin.f32 %v676, %v680
          %v745 = vmin.f32 %v743, %v682
          %v746 = vmin.f32 %v744, %v684
          %v747 = vmin.f32 %v745, %v686
          %v748 = vmin.f32 %v746, %v688
          %v749 = vmin.f32 %v747, %v690
          %v750 = vmin.f32 %v748, %v692
          %v751 = vmin.f32 %v749, %v694
          %v752 = vmin.f32 %v750, %v696
          %v753 = vmin.f32 %v751, %v698
          %v754 = vmin.f32 %v752, %v700
          %v755 = vmin.f32 %v753, %v702
          %v756 = vmin.f32 %v754, %v704
          %v757 = vmin.f32 %v755, %v756
          %v758 = vrot.slane %v757, 4
          %v759 = vmin.f32 %v757, %v758
          %v760 = vrot.slane %v759, 2
          %v761 = vmin.f32 %v759, %v760
          %v762 = vrot.slane %v761, 1
          %v763 = vmin.f32 %v761, %v762
          %vm764 = vcmp.eq.f32.partialorder %v673, %v742
          %vm765 = vcmp.eq.f32.partialorder %v674, %v763
          %vm766 = vcmp.eq.f32.partialorder %v675, %v742
          %vm767 = vcmp.eq.f32.partialorder %v676, %v763
          %vm768 = vcmp.eq.f32.partialorder %v677, %v742
          %vm769 = vcmp.eq.f32.partialorder %v678, %v763
          %vm770 = vcmp.eq.f32.partialorder %v679, %v742
          %vm771 = vcmp.eq.f32.partialorder %v680, %v763
          %vm772 = vcmp.eq.f32.partialorder %v681, %v742
          %vm773 = vcmp.eq.f32.partialorder %v682, %v763
          %vm774 = vcmp.eq.f32.partialorder %v683, %v742
          %vm775 = vcmp.eq.f32.partialorder %v684, %v763
          %vm776 = vcmp.eq.f32.partialorder %v685, %v742
          %vm777 = vcmp.eq.f32.partialorder %v686, %v763
          %vm778 = vcmp.eq.f32.partialorder %v687, %v742
          %vm779 = vcmp.eq.f32.partialorder %v688, %v763
          %vm780 = vcmp.eq.f32.partialorder %v689, %v742
          %vm781 = vcmp.eq.f32.partialorder %v690, %v763
          %vm782 = vcmp.eq.f32.partialorder %v691, %v742
          %vm783 = vcmp.eq.f32.partialorder %v692, %v763
          %vm784 = vcmp.eq.f32.partialorder %v693, %v742
          %vm785 = vcmp.eq.f32.partialorder %v694, %v763
          %vm786 = vcmp.eq.f32.partialorder %v695, %v742
          %vm787 = vcmp.eq.f32.partialorder %v696, %v763
          %vm788 = vcmp.eq.f32.partialorder %v697, %v742
          %vm789 = vcmp.eq.f32.partialorder %v698, %v763
          %vm790 = vcmp.eq.f32.partialorder %v699, %v742
          %vm791 = vcmp.eq.f32.partialorder %v700, %v763
          %vm792 = vcmp.eq.f32.partialorder %v701, %v742
          %vm793 = vcmp.eq.f32.partialorder %v702, %v763
          %vm794 = vcmp.eq.f32.partialorder %v703, %v742
          %vm795 = vcmp.eq.f32.partialorder %v704, %v763
          %v796 = vsel %vm764, %v706, 128
          %v797 = vsel %vm765, %v706, 128
          %v798 = vsel %vm766, %v707, 128
          %v799 = vsel %vm767, %v707, 128
          %v800 = vsel %vm768, %v708, 128
          %v801 = vsel %vm769, %v708, 128
          %v802 = vsel %vm770, %v709, 128
          %v803 = vsel %vm771, %v709, 128
          %v804 = vsel %vm772, %v710, 128
          %v805 = vsel %vm773, %v710, 128
          %v806 = vsel %vm774, %v711, 128
          %v807 = vsel %vm775, %v711, 128
          %v808 = vsel %vm776, %v712, 128
          %v809 = vsel %vm777, %v712, 128
          %v810 = vsel %vm778, %v713, 128
          %v811 = vsel %vm779, %v713, 128
          %v812 = vsel %vm780, %v714, 128
          %v813 = vsel %vm781, %v714, 128
          %v814 = vsel %vm782, %v715, 128
          %v815 = vsel %vm783, %v715, 128
          %v816 = vsel %vm784, %v716, 128
          %v817 = vsel %vm785, %v716, 128
          %v818 = vsel %vm786, %v717, 128
          %v819 = vsel %vm787, %v717, 128
          %v820 = vsel %vm788, %v718, 128
          %v821 = vsel %vm789, %v718, 128
          %v822 = vsel %vm790, %v719, 128
          %v823 = vsel %vm791, %v719, 128
          %v824 = vsel %vm792, %v720, 128
          %v825 = vsel %vm793, %v720, 128
          %v826 = vsel %vm794, %v721, 128
          %v827 = vsel %vm795, %v721, 128
          %vm828 = vcmp.lt.s32.totalorder %v796, %v800
          %v829 = vsel %vm828, %v796, %v800
          %vm830 = vcmp.lt.s32.totalorder %v798, %v802
          %v831 = vsel %vm830, %v798, %v802
          %vm832 = vcmp.lt.s32.totalorder %v829, %v804
          %v833 = vsel %vm832, %v829, %v804
          %vm834 = vcmp.lt.s32.totalorder %v831, %v806
          %v835 = vsel %vm834, %v831, %v806
          %vm836 = vcmp.lt.s32.totalorder %v833, %v808
          %v837 = vsel %vm836, %v833, %v808
          %vm838 = vcmp.lt.s32.totalorder %v835, %v810
          %v839 = vsel %vm838, %v835, %v810
          %vm840 = vcmp.lt.s32.totalorder %v837, %v812
          %v841 = vsel %vm840, %v837, %v812
          %vm842 = vcmp.lt.s32.totalorder %v839, %v814
          %v843 = vsel %vm842, %v839, %v814
          %vm844 = vcmp.lt.s32.totalorder %v841, %v816
          %v845 = vsel %vm844, %v841, %v816
          %vm846 = vcmp.lt.s32.totalorder %v843, %v818
          %v847 = vsel %vm846, %v843, %v818
          %vm848 = vcmp.lt.s32.totalorder %v845, %v820
          %v849 = vsel %vm848, %v845, %v820
          %vm850 = vcmp.lt.s32.totalorder %v847, %v822
          %v851 = vsel %vm850, %v847, %v822
          %vm852 = vcmp.lt.s32.totalorder %v849, %v824
          %v853 = vsel %vm852, %v849, %v824
          %vm854 = vcmp.lt.s32.totalorder %v851, %v826
          %v855 = vsel %vm854, %v851, %v826
          %vm856 = vcmp.lt.s32.totalorder %v853, %v855
          %v857 = vsel %vm856, %v853, %v855
          %v858 = vrot.slane %v857, 4
          %vm859 = vcmp.lt.s32.totalorder %v857, %v858
          %v860 = vsel %vm859, %v857, %v858
          %v861 = vrot.slane %v860, 2
          %vm862 = vcmp.lt.s32.totalorder %v860, %v861
          %v863 = vsel %vm862, %v860, %v861
          %v864 = vrot.slane %v863, 1
          %vm865 = vcmp.lt.s32.totalorder %v863, %v864
          %v866 = vsel %vm865, %v863, %v864
          %vm867 = vcmp.lt.s32.totalorder %v797, %v801
          %v868 = vsel %vm867, %v797, %v801
          %vm869 = vcmp.lt.s32.totalorder %v799, %v803
          %v870 = vsel %vm869, %v799, %v803
          %vm871 = vcmp.lt.s32.totalorder %v868, %v805
          %v872 = vsel %vm871, %v868, %v805
          %vm873 = vcmp.lt.s32.totalorder %v870, %v807
          %v874 = vsel %vm873, %v870, %v807
          %vm875 = vcmp.lt.s32.totalorder %v872, %v809
          %v876 = vsel %vm875, %v872, %v809
          %vm877 = vcmp.lt.s32.totalorder %v874, %v811
          %v878 = vsel %vm877, %v874, %v811
          %vm879 = vcmp.lt.s32.totalorder %v876, %v813
          %v880 = vsel %vm879, %v876, %v813
          %vm881 = vcmp.lt.s32.totalorder %v878, %v815
          %v882 = vsel %vm881, %v878, %v815
          %vm883 = vcmp.lt.s32.totalorder %v880, %v817
          %v884 = vsel %vm883, %v880, %v817
          %vm885 = vcmp.lt.s32.totalorder %v882, %v819
          %v886 = vsel %vm885, %v882, %v819
          %vm887 = vcmp.lt.s32.totalorder %v884, %v821
          %v888 = vsel %vm887, %v884, %v821
          %vm889 = vcmp.lt.s32.totalorder %v886, %v823
          %v890 = vsel %vm889, %v886, %v823
          %vm891 = vcmp.lt.s32.totalorder %v888, %v825
          %v892 = vsel %vm891, %v888, %v825
          %vm893 = vcmp.lt.s32.totalorder %v890, %v827
          %v894 = vsel %vm893, %v890, %v827
          %vm895 = vcmp.lt.s32.totalorder %v892, %v894
          %v896 = vsel %vm895, %v892, %v894
          %v897 = vrot.slane %v896, 4
          %vm898 = vcmp.lt.s32.totalorder %v896, %v897
          %v899 = vsel %vm898, %v896, %v897
          %v900 = vrot.slane %v899, 2
          %vm901 = vcmp.lt.s32.totalorder %v899, %v900
          %v902 = vsel %vm901, %v899, %v900
          %v903 = vrot.slane %v902, 1
          %vm904 = vcmp.lt.s32.totalorder %v902, %v903
          %v905 = vsel %vm904, %v902, %v903
          %vm906 = vcmp.eq.s32.totalorder %v796, %v866
          %vm907 = vcmp.eq.s32.totalorder %v797, %v905
          %vm908 = vcmp.eq.s32.totalorder %v798, %v866
          %vm909 = vcmp.eq.s32.totalorder %v799, %v905
          %vm910 = vcmp.eq.s32.totalorder %v800, %v866
          %vm911 = vcmp.eq.s32.totalorder %v801, %v905
          %vm912 = vcmp.eq.s32.totalorder %v802, %v866
          %vm913 = vcmp.eq.s32.totalorder %v803, %v905
          %vm914 = vcmp.eq.s32.totalorder %v804, %v866
          %vm915 = vcmp.eq.s32.totalorder %v805, %v905
          %vm916 = vcmp.eq.s32.totalorder %v806, %v866
          %vm917 = vcmp.eq.s32.totalorder %v807, %v905
          %vm918 = vcmp.eq.s32.totalorder %v808, %v866
          %vm919 = vcmp.eq.s32.totalorder %v809, %v905
          %vm920 = vcmp.eq.s32.totalorder %v810, %v866
          %vm921 = vcmp.eq.s32.totalorder %v811, %v905
          %vm922 = vcmp.eq.s32.totalorder %v812, %v866
          %vm923 = vcmp.eq.s32.totalorder %v813, %v905
          %vm924 = vcmp.eq.s32.totalorder %v814, %v866
          %vm925 = vcmp.eq.s32.totalorder %v815, %v905
          %vm926 = vcmp.eq.s32.totalorder %v816, %v866
          %vm927 = vcmp.eq.s32.totalorder %v817, %v905
          %vm928 = vcmp.eq.s32.totalorder %v818, %v866
          %vm929 = vcmp.eq.s32.totalorder %v819, %v905
          %vm930 = vcmp.eq.s32.totalorder %v820, %v866
          %vm931 = vcmp.eq.s32.totalorder %v821, %v905
          %vm932 = vcmp.eq.s32.totalorder %v822, %v866
          %vm933 = vcmp.eq.s32.totalorder %v823, %v905
          %vm934 = vcmp.eq.s32.totalorder %v824, %v866
          %vm935 = vcmp.eq.s32.totalorder %v825, %v905
          %vm936 = vcmp.eq.s32.totalorder %v826, %v866
          %vm937 = vcmp.eq.s32.totalorder %v827, %v905
          %v938 = vsel %vm906, 1, 0
          %v939 = vsel %vm907, 1, 0
          %v940 = vsel %vm908, 1, 0
          %v941 = vsel %vm909, 1, 0
          %v942 = vsel %vm910, 1, 0
          %v943 = vsel %vm911, 1, 0
          %v944 = vsel %vm912, 1, 0
          %v945 = vsel %vm913, 1, 0
          %v946 = vsel %vm914, 1, 0
          %v947 = vsel %vm915, 1, 0
          %v948 = vsel %vm916, 1, 0
          %v949 = vsel %vm917, 1, 0
          %v950 = vsel %vm918, 1, 0
          %v951 = vsel %vm919, 1, 0
          %v952 = vsel %vm920, 1, 0
          %v953 = vsel %vm921, 1, 0
          %v954 = vsel %vm922, 1, 0
          %v955 = vsel %vm923, 1, 0
          %v956 = vsel %vm924, 1, 0
          %v957 = vsel %vm925, 1, 0
          %v958 = vsel %vm926, 1, 0
          %v959 = vsel %vm927, 1, 0
          %v960 = vsel %vm928, 1, 0
          %v961 = vsel %vm929, 1, 0
          %v962 = vsel %vm930, 1, 0
          %v963 = vsel %vm931, 1, 0
          %v964 = vsel %vm932, 1, 0
          %v965 = vsel %vm933, 1, 0
          %v966 = vsel %vm934, 1, 0
          %v967 = vsel %vm935, 1, 0
          %v968 = vsel %vm936, 1, 0
          %v969 = vsel %vm937, 1, 0
          %v970 = vcvt.s32.f32 %v938
          %v971 = vcvt.s32.f32 %v939
          %v972 = vcvt.s32.f32 %v940
          %v973 = vcvt.s32.f32 %v941
          %v974 = vcvt.s32.f32 %v942
          %v975 = vcvt.s32.f32 %v943
          %v976 = vcvt.s32.f32 %v944
          %v977 = vcvt.s32.f32 %v945
          %v978 = vcvt.s32.f32 %v946
          %v979 = vcvt.s32.f32 %v947
          %v980 = vcvt.s32.f32 %v948
          %v981 = vcvt.s32.f32 %v949
          %v982 = vcvt.s32.f32 %v950
          %v983 = vcvt.s32.f32 %v951
          %v984 = vcvt.s32.f32 %v952
          %v985 = vcvt.s32.f32 %v953
          %v986 = vcvt.s32.f32 %v954
          %v987 = vcvt.s32.f32 %v955
          %v988 = vcvt.s32.f32 %v956
          %v989 = vcvt.s32.f32 %v957
          %v990 = vcvt.s32.f32 %v958
          %v991 = vcvt.s32.f32 %v959
          %v992 = vcvt.s32.f32 %v960
          %v993 = vcvt.s32.f32 %v961
          %v994 = vcvt.s32.f32 %v962
          %v995 = vcvt.s32.f32 %v963
          %v996 = vcvt.s32.f32 %v964
          %v997 = vcvt.s32.f32 %v965
          %v998 = vcvt.s32.f32 %v966
          %v999 = vcvt.s32.f32 %v967
          %v1000 = vcvt.s32.f32 %v968
          %v1001 = vcvt.s32.f32 %v969
          %1002 = vxpose.xlu0.b32.start [1/16] %v319, 128
          %1003 = vxpose.xlu0.b32.cont [2/16] %v320, 128
          %1004 = vxpose.xlu0.b32.cont [3/16] %v321, 128
          %1005 = vxpose.xlu0.b32.cont [4/16] %v322, 128
          %1006 = vxpose.xlu0.b32.cont [5/16] %v323, 128
          %1007 = vxpose.xlu0.b32.cont [6/16] %v324, 128
          %1008 = vxpose.xlu0.b32.cont [7/16] %v325, 128
          %1009 = vxpose.xlu0.b32.cont [8/16] %v326, 128
          %1010 = vxpose.xlu0.b32.cont [9/16] %v327, 128
          %1011 = vxpose.xlu0.b32.cont [10/16] %v328, 128
          %1012 = vxpose.xlu0.b32.cont [11/16] %v329, 128
          %1013 = vxpose.xlu0.b32.cont [12/16] %v330, 128
          %1014 = vxpose.xlu0.b32.cont [13/16] %v331, 128
          %1015 = vxpose.xlu0.b32.cont [14/16] %v332, 128
          %1016 = vxpose.xlu0.b32.cont [15/16] %v333, 128
          %1017 = vxpose.xlu0.b32.end [16/16] %v334, 128
          %v1018 = vpop.trf.xlu0
          %v1019 = vpop.trf.xlu0
          %v1020 = vpop.trf.xlu0
          %v1021 = vpop.trf.xlu0
          %v1022 = vpop.trf.xlu0
          %v1023 = vpop.trf.xlu0
          %v1024 = vpop.trf.xlu0
          %v1025 = vpop.trf.xlu0
          %v1026 = vpop.trf.xlu0
          %v1027 = vpop.trf.xlu0
          %v1028 = vpop.trf.xlu0
          %v1029 = vpop.trf.xlu0
          %v1030 = vpop.trf.xlu0
          %v1031 = vpop.trf.xlu0
          %v1032 = vpop.trf.xlu0
          %v1033 = vpop.trf.xlu0
          %1034 = vmatprep.subr.mxu0 %v971
          %1035 = vmatpush1.msra.mxu0 %v970
          %1036 = vmatprep.subr.mxu0 %v973
          %1037 = vmatpush1.msra.mxu0 %v972
          %1038 = vmatprep.subr.mxu0 %v975
          %1039 = vmatpush1.msra.mxu0 %v974
          %1040 = vmatprep.subr.mxu0 %v977
          %1041 = vmatpush1.msra.mxu0 %v976
          %1042 = vmatprep.subr.mxu0 %v979
          %1043 = vmatpush1.msra.mxu0 %v978
          %1044 = vmatprep.subr.mxu0 %v981
          %1045 = vmatpush1.msra.mxu0 %v980
          %1046 = vmatprep.subr.mxu0 %v983
          %1047 = vmatpush1.msra.mxu0 %v982
          %1048 = vmatprep.subr.mxu0 %v985
          %1049 = vmatpush1.msra.mxu0 %v984
          %1050 = vmatprep.subr.mxu0 %v987
          %1051 = vmatpush1.msra.mxu0 %v986
          %1052 = vmatprep.subr.mxu0 %v989
          %1053 = vmatpush1.msra.mxu0 %v988
          %1054 = vmatprep.subr.mxu0 %v991
          %1055 = vmatpush1.msra.mxu0 %v990
          %1056 = vmatprep.subr.mxu0 %v993
          %1057 = vmatpush1.msra.mxu0 %v992
          %1058 = vmatprep.subr.mxu0 %v995
          %1059 = vmatpush1.msra.mxu0 %v994
          %1060 = vmatprep.subr.mxu0 %v997
          %1061 = vmatpush1.msra.mxu0 %v996
          %1062 = vmatprep.subr.mxu0 %v999
          %1063 = vmatpush1.msra.mxu0 %v998
          %1064 = vmatprep.subr.mxu0 %v1001
          %1065 = vmatpush1.msra.mxu0 %v1000
          %1066 = vmatprep.subr.mxu0 0.0
          %1067 = vmatpush1.msra.mxu0 0.0
          %1068 = vmatprep.subr.mxu0 0.0
          %1069 = vmatpush1.msra.mxu0 0.0
          %1070 = vmatprep.subr.mxu0 0.0
          %1071 = vmatpush1.msra.mxu0 0.0
          %1072 = vmatprep.subr.mxu0 0.0
          %1073 = vmatpush1.msra.mxu0 0.0
          %1074 = vmatprep.subr.mxu0 0.0
          %1075 = vmatpush1.msra.mxu0 0.0
          %1076 = vmatprep.subr.mxu0 0.0
          %1077 = vmatpush1.msra.mxu0 0.0
          %1078 = vmatprep.subr.mxu0 0.0
          %1079 = vmatpush1.msra.mxu0 0.0
          %1080 = vmatprep.subr.mxu0 0.0
          %1081 = vmatpush1.msra.mxu0 0.0
          %1082 = vmatprep.subr.mxu0 0.0
          %1083 = vmatpush1.msra.mxu0 0.0
          %1084 = vmatprep.subr.mxu0 0.0
          %1085 = vmatpush1.msra.mxu0 0.0
          %1086 = vmatprep.subr.mxu0 0.0
          %1087 = vmatpush1.msra.mxu0 0.0
          %1088 = vmatprep.subr.mxu0 0.0
          %1089 = vmatpush1.msra.mxu0 0.0
          %1090 = vmatprep.subr.mxu0 0.0
          %1091 = vmatpush1.msra.mxu0 0.0
          %1092 = vmatprep.subr.mxu0 0.0
          %1093 = vmatpush1.msra.mxu0 0.0
          %1094 = vmatprep.subr.mxu0 0.0
          %1095 = vmatpush1.msra.mxu0 0.0
          %1096 = vmatprep.subr.mxu0 0.0
          %1097 = vmatpush1.msra.mxu0 0.0
          %1098 = vmatprep.mubr.f32.mxu0 0.0
          %1099 = vmatmul.mubr.f32.gmra.mrb[0].mxu0 %v1018
          %v1100 = vpop.f32.mrb[0].mxu0
          %v1101 = vadd.f32 0.0, %v1100
          %v1102 = vpop.f32.mrb[0].mxu0
          %v1103 = vadd.f32 0.0, %v1102
          %1104 = vmatprep.mubr.f32.mxu0 0.0
          %1105 = vmatmul.mubr.f32.gmra.mrb[0].mxu0 %v1019
          %v1106 = vpop.f32.mrb[0].mxu0
          %v1107 = vadd.f32 0.0, %v1106
          %v1108 = vpop.f32.mrb[0].mxu0
          %v1109 = vadd.f32 0.0, %v1108
          %1110 = vdwg.mxu0
          %s1111 = smul.addr %s375, 8
          %s1112 = scalar_lea.vmem %s274, %s1111 [#allocation2]
          %1113 = vst [vmem:[%s1112] sm:$0xff] %v1101
          %1114 = vst [vmem:[%s1112 + $0x8] sm:$0xff] %v1103
          %1115 = vst [vmem:[%s1112 + $0x20] sm:$0xff] %v1107
          %1116 = vst [vmem:[%s1112 + $0x28] sm:$0xff] %v1109
          %v1117 = vcombine.low %v866, %v905
          %v1119 = vunpack.c.l.s4 1966171168
          %v1120 = vunpack.c.0.s8 %v1119
          %v1121 = vlaneseq
          %v1122 = vshrl.u32 %v1121, 7
          %v1123 = vsub.s32 %v1120, %v1122
          %v1124 = vrot.slane %v1117, %v1123
          %v1126 = vunpack.c.l.s4 1966171168
          %v1127 = vunpack.c.0.s8 %v1126
          %v1128 = vlaneseq
          %v1129 = vshrl.u32 %v1128, 7
          %v1130 = vsub.s32 %v1127, %v1129
          %v1131 = vrot.slane %v1124, %v1130
          %s1132 = scalar_lea.vmem %s311, %s375
          %v1133 = vlaneseq
          %vm1134 = vcmp.ge.s32.totalorder %v1133, 0
          %vm1135 = vcmp.lt.s32.totalorder %v1133, 256
          %vm1136 = vmand %vm1134, %vm1135
          %1137 = vst.msk [vmem:[%s1132] sm:$0x3] %vm1136, %v1131
          %v1138 = vmul.f32 %v379, %v379
          %v1139 = vmul.f32 %v380, %v380
          %v1140 = vmul.f32 %v381, %v381
          %v1141 = vmul.f32 %v382, %v382
          %v1142 = vadd.f32 %v1138, %v1139
          %v1143 = vadd.f32 %v1142, %v1140
          %v1144 = vadd.f32 %v1143, %v1141
          %1145 = vadd.xlane.f32.xlu0 %v1144
          %v1146 = vpop.xlane.xlu0 %1145
          %v1147 = vrot.slane %v1146, 4
          %v1148 = vadd.f32 %v1146, %v1147
          %v1149 = vrot.slane %v1148, 2
          %v1150 = vadd.f32 %v1148, %v1149
          %v1151 = vrot.slane %v1150, 1
          %v1152 = vadd.f32 %v1150, %v1151
          %s1153 = vtos %v1152
          %vm1154 = vcmask 1040384
          %v1155 = vsel %vm1154, %v742, 0.0
          %v1156 = vsel %vm1154, %v763, 0.0
          %v1157 = vadd.f32 %v1155, %v1156
          %1158 = vadd.xlane.f32.xlu0 %v1157
          %v1159 = vpop.xlane.xlu0 %1158
          %v1160 = vrot.slane %v1159, 4
          %v1161 = vadd.f32 %v1159, %v1160
          %v1162 = vrot.slane %v1161, 2
          %v1163 = vadd.f32 %v1161, %v1162
          %v1164 = vrot.slane %v1163, 1
          %v1165 = vadd.f32 %v1163, %v1164
          %s1166 = vtos %v1165
          %s1167 = sadd.f32 %s1153, %s1166
          %v1168 = vstv %s1167
          %v1169 = vadd.f32 %v373, %v1168
        $region41: #{quantizer_wave_forward.1} parent=35 // loop_footer
          %s372 = sadd.s32 1, %s368
        $region42: #{quantizer_wave_forward.1} parent=35 // loop_footer_branch
          %367 = sbr.rel target = $region38
        $region43: #{quantizer_wave_forward.1} parent=35 // loop_exit
          _
        %vm1170 = vcmask 0
        %1171 = vst.msk [vmem:[%s318] sm:$0x1] %vm1170, %v373
        %s1172 = sand.u32 %s134, 1
        %s1173 = scalar_lea.sflag [#allocation3], %s1172
        %s1174 = sand.u32 %s134, 1
        %s1175 = smul.addr %s1174, 64
        %s1176 = scalar_lea.vmem [#allocation2], %s1175
        %s1177 = smul.u32 4, %s26
        %p1178 = scmp.lt.s32.totalorder %s25, 1
        %s1179 = scalar_select %p1178, %s25, 1
        %p1180 = scmp.lt.s32.totalorder %s1177, 3
        %s1181 = scalar_select %p1180, %s1177, 3
        %s1182 = smul.addr %s1179, 4
        %s1183 = sadd.s32 %s1181, %s1182
        %s1184 = scalar_lea.vmem %s5, %s1183
        %p1185 = scmp.lt.s32.totalorder %s25, 1
        %s1186 = scalar_select %p1185, %s25, 1
        %p1187 = scmp.lt.s32.totalorder %s26, 0
        %s1188 = scalar_select %p1187, %s26, 0
        %s1189 = sadd.s32 %s1188, %s1186
        %s1190 = scalar_lea.vmem %s6, %s1189
        // Predicated region
        $region44: #{quantizer_wave_forward.1} parent=35 // pred_check
          %p1191 = pneg %p144
        $region45: #{quantizer_wave_forward.1} parent=35 // pred_check_branch
          %1193 = sbr.rel (%p1191) target = $region47
        $region46: #{quantizer_wave_forward.1} parent=35 // pred_region
          %s1194 = smul.u32 4, %s26
          %s1196 = ssub.s32 1024, 1024
          %1197 = vsyncadd %s1173, %s1196
          %s1198 = smul.addr %s25, 8
          %s1199 = sadd.s32 %s1194, %s1198
          %s1200 = smul.addr %s1199, 128
          %s1201 = scalar_lea.hbm %s4, %s1200
          %s1202 = sshll.u32 %s1176, 4
          %s1203 = int_to_ptr.vmem [resolvable:$true] %s1202
          %1208 = dma.vmem_to_hbm [thread:$0]  %s1203, 1024, %s1201, %s1173, 512, 512, 32
        $region47: #{quantizer_wave_forward.1} parent=35 // pred_fallthru
          _
        // Predicated region
        $region48: #{quantizer_wave_forward.1} parent=35 // pred_check
          %p1209 = pneg %p172
        $region49: #{quantizer_wave_forward.1} parent=35 // pred_check_branch
          %1211 = sbr.rel (%p1209) target = $region51
        $region50: #{quantizer_wave_forward.1} parent=35 // pred_region
          %s1212 = smul.u32 4, %s26
        $region51: #{quantizer_wave_forward.1} parent=35 // pred_fallthru
          _
        // Predicated region
        $region52: #{quantizer_wave_forward.1} parent=35 // pred_check
          %p1213 = pneg %p200
        $region53: #{quantizer_wave_forward.1} parent=35 // pred_check_branch
          %1215 = sbr.rel (%p1213) target = $region55
        $region54: #{quantizer_wave_forward.1} parent=35 // pred_region
          _
        $region55: #{quantizer_wave_forward.1} parent=35 // pred_fallthru
          _
      $region36: #{quantizer_wave_forward.1} parent=5 // pred_fallthru
        _
      %p1216 = scmp.le.s32.totalorder 2, %s16
      // Predicated region
      $region56: #{quantizer_wave_forward.1} parent=5 // pred_check
        %p1217 = pneg %p1216
      $region57: #{quantizer_wave_forward.1} parent=5 // pred_check_branch
        %1219 = sbr.rel (%p1217) target = $region59
      $region58: #{quantizer_wave_forward.1} parent=5 // pred_region
        %s1220 = ssub.s32 %s16, 2
        // Predicated region
        $region60: #{quantizer_wave_forward.1} parent=58 // pred_check
          %p1221 = pneg %p150
        $region61: #{quantizer_wave_forward.1} parent=58 // pred_check_branch
          %1223 = sbr.rel (%p1221) target = $region63
        $region62: #{quantizer_wave_forward.1} parent=58 // pred_region
          %s1224 = sand.u32 %s135, 1
          %s1225 = scalar_lea.sflag [#allocation3], %s1224
          %s1226 = sand.u32 %s135, 1
          %s1227 = smul.addr %s1226, 64
          %s1228 = scalar_lea.vmem [#allocation2], %s1227
          %1229 = dma.done %s1225, 1024
        $region63: #{quantizer_wave_forward.1} parent=58 // pred_fallthru
          _
        // Predicated region
        $region64: #{quantizer_wave_forward.1} parent=58 // pred_check
          %p1230 = pneg %p178
        $region65: #{quantizer_wave_forward.1} parent=58 // pred_check_branch
          %1232 = sbr.rel (%p1230) target = $region67
        $region66: #{quantizer_wave_forward.1} parent=58 // pred_region
          %s1233 = smul.u32 4, %s28
          %p1234 = scmp.lt.s32.totalorder %s27, 1
          %s1235 = scalar_select %p1234, %s27, 1
          %p1236 = scmp.lt.s32.totalorder %s1233, 3
          %s1237 = scalar_select %p1236, %s1233, 3
          %s1238 = smul.addr %s1235, 4
          %s1239 = sadd.s32 %s1237, %s1238
          %s1240 = scalar_lea.vmem %s5, %s1239
        $region67: #{quantizer_wave_forward.1} parent=58 // pred_fallthru
          _
        // Predicated region
        $region68: #{quantizer_wave_forward.1} parent=58 // pred_check
          %p1241 = pneg %p206
        $region69: #{quantizer_wave_forward.1} parent=58 // pred_check_branch
          %1243 = sbr.rel (%p1241) target = $region71
        $region70: #{quantizer_wave_forward.1} parent=58 // pred_region
          %p1244 = scmp.lt.s32.totalorder %s27, 1
          %s1245 = scalar_select %p1244, %s27, 1
          %p1246 = scmp.lt.s32.totalorder %s28, 0
          %s1247 = scalar_select %p1246, %s28, 0
          %s1248 = sadd.s32 %s1247, %s1245
          %s1249 = scalar_lea.vmem %s6, %s1248
        $region71: #{quantizer_wave_forward.1} parent=58 // pred_fallthru
          _
      $region59: #{quantizer_wave_forward.1} parent=5 // pred_fallthru
        _
    $region6: #{quantizer_wave_forward.1} parent=1 // loop_footer
      %s20 = sadd.s32 1, %s16
    $region7: #{quantizer_wave_forward.1} parent=1 // loop_footer_branch
      %15 = sbr.rel target = $region3
    $region8: #{quantizer_wave_forward.1} parent=1 // loop_exit
      _
    %1250 = vsyncpa [#allocation3], 1
    %s1251 = scalar_lea.sflag [#allocation3], 1
    %1252 = vsyncpa %s1251, 1

</llo_original>
